<compile_context>
chip_gen: v7x
topology: tpu7x:2x2x1
jax: 0.10.0
libtpu: 0.0.40
codegen_flags: <defaults>
</compile_context>

<pallas_src>
import math

import jax
import jax.numpy as jnp
from jax.experimental import pallas as pl
from jax.experimental.pallas import tpu as pltpu


def _chip_config():
    """Returns (target_block_bytes, vmem_limit_bytes) tuned to local VMEM size."""
    try:
        vmem_cap = int(pltpu.get_tpu_info().vmem_capacity_bytes)
    except Exception:
        vmem_cap = 64 * 1024 * 1024            # conservative (v7x-sized) fallback
    if vmem_cap >= 96 * 1024 * 1024:           # v5e / v6e: 128 MiB physical VMEM
        return 12 * 1024 * 1024, 64 * 1024 * 1024
    return 6 * 1024 * 1024, 48 * 1024 * 1024   # v7x: 64 MiB physical VMEM


def _channel_attention(w_ref, pooled, k, pad, C):
    """k-tap zero-padded Conv1d over channels + sigmoid, on a (rows, C) value.

    pooled: (rows, C) f32 value with C on the lane dim.  w_ref: (k,) SMEM taps.
    Done entirely in vregs: zero border via lane-dim concatenate, k static
    shifted slices, scalar multiply-adds (VPU) — no VMEM scratch round trip.
    """
    rows = pooled.shape[0]
    if pad > 0:
        z = jnp.zeros((rows, pad), jnp.float32)
        padded = jnp.concatenate([z, pooled, z], axis=-1)   # (rows, C + 2*pad)
    else:
        padded = pooled
    v = jnp.zeros((rows, C), jnp.float32)
    for j in range(k):                                      # k is tiny & static
        v = v + w_ref[j] * padded[:, j:j + C]
    return jax.nn.sigmoid(v)                                # (rows, C)


def _eca_fused(xr, conv_w, k, pad, inv_hw, target_block_bytes, vmem_limit):
    """Single-pass kernel: each grid step streams a (TB, C, HW) batch block."""
    B, C, HW = xr.shape
    itemsize = xr.dtype.itemsize
    bytes_per_sample = C * HW * itemsize

    TB = min(B, max(1, target_block_bytes // bytes_per_sample))
    if B >= 2:
        # Keep several grid steps so dimension_semantics=("parallel",) can shard
        # batch blocks across v7x's two TensorCores, but never shrink blocks
        # below ~1 MiB (per-step pipeline overhead would start to show).
        min_tb = max(1, (1 << 20) // bytes_per_sample)
        TB = min(TB, max(min_tb, B // 4))
    n_b = -(-B // TB)                                       # cdiv; TB need not divide B

    block_bytes = TB * bytes_per_sample
    if 4 * block_bytes + (2 << 20) > vmem_limit:
        # Only reachable for huge single samples with HW <= 128 (chunked path
        # not applicable).  Best effort: raise the scoped limit.
        # TODO(synk): add a channel-split fallback if this ever exceeds physical VMEM.
        vmem_limit = 4 * block_bytes + (2 << 20)

    def kernel(w_ref, x_ref, o_ref):
        # w_ref: (k,) SMEM conv taps.  x_ref / o_ref: (TB, C, HW) VMEM.
        # Global average pool over spatial (f32 accumulation, multiply by 1/HW).
        pooled = jnp.sum(x_ref[...].astype(jnp.float32), axis=-1) * inv_hw   # (TB, C)
        s = _channel_attention(w_ref, pooled, k, pad, C).astype(o_ref.dtype)
        # Re-read x and write the scaled block in the input dtype.
        o_ref[...] = x_ref[...] * s[:, :, None]

    return pl.pallas_call(
        kernel,
        out_shape=jax.ShapeDtypeStruct((B, C, HW), xr.dtype),
        grid_spec=pltpu.PrefetchScalarGridSpec(
            num_scalar_prefetch=0,
            grid=(n_b,),
            in_specs=[
                pl.BlockSpec(memory_space=pltpu.MemorySpace.SMEM),      # conv taps
                pl.BlockSpec((TB, C, HW), lambda b: (b, 0, 0)),         # x block
            ],
            out_specs=pl.BlockSpec((TB, C, HW), lambda b: (b, 0, 0)),
        ),
        compiler_params=pltpu.CompilerParams(
            dimension_semantics=("parallel",),
            vmem_limit_bytes=vmem_limit,
        ),
    )(conv_w, xr)


def _eca_chunked(xr, conv_w, k, pad, inv_hw, target_block_bytes, vmem_limit):
    """Fallback for large per-sample footprints: split the spatial axis.

    Pass 1 accumulates the per-sample pooled sum across HW chunks (resident
    (1, 1, C) output block as the accumulator) and finalizes conv+sigmoid on
    the last chunk.  Pass 2 streams x again and scales by the channel weights.
    """
    B, C, HW = xr.shape
    itemsize = xr.dtype.itemsize

    THW = (target_block_bytes // (C * itemsize)) // 128 * 128
    THW = int(max(128, min(THW, (HW // 128) * 128)))        # multiple of 128, <= HW
    n_hw = -(-HW // THW)
    needs_mask = (HW % THW) != 0

    def pool_kernel(w_ref, x_ref, s_ref):
        # w_ref: (k,) SMEM.  x_ref: (1, C, THW).  s_ref: (1, 1, C) f32 accumulator.
        hw_i = pl.program_id(1)

        @pl.when(hw_i == 0)
        def _():
            s_ref[...] = jnp.zeros_like(s_ref)

        xv = x_ref[...].astype(jnp.float32)                 # (1, C, THW)
        if needs_mask:
            lane = jax.lax.broadcasted_iota(jnp.int32, xv.shape, 2) + hw_i * THW
            xv = jnp.where(lane < HW, xv, 0.0)              # zero the OOB tail
        s_ref[...] += jnp.sum(xv, axis=-1)[:, None, :]      # partial sums, (1, 1, C)

        @pl.when(hw_i == pl.num_programs(1) - 1)
        def _():
            pooled = s_ref[0] * inv_hw                      # (1, C)
            s = _channel_attention(w_ref, pooled, k, pad, C)
            s_ref[...] = s[:, None, :]                      # (1, 1, C) attention

    s = pl.pallas_call(
        pool_kernel,
        out_shape=jax.ShapeDtypeStruct((B, 1, C), jnp.float32),
        grid_spec=pltpu.PrefetchScalarGridSpec(
            num_scalar_prefetch=0,
            grid=(B, n_hw),
            in_specs=[
                pl.BlockSpec(memory_space=pltpu.MemorySpace.SMEM),
                pl.BlockSpec((1, C, THW), lambda b, c: (b, 0, c)),
            ],
            out_specs=pl.BlockSpec((1, 1, C), lambda b, c: (b, 0, 0)),
        ),
        compiler_params=pltpu.CompilerParams(
            dimension_semantics=("parallel", "arbitrary"),
            vmem_limit_bytes=vmem_limit,
        ),
    )(conv_w, xr)

    def scale_kernel(s_ref, x_ref, o_ref):
        # s_ref: (1, 1, C).  x_ref / o_ref: (1, C, THW).
        sv = s_ref[0].astype(o_ref.dtype)                   # (1, C)
        o_ref[...] = x_ref[...] * sv[:, :, None]

    return pl.pallas_call(
        scale_kernel,
        out_shape=jax.ShapeDtypeStruct((B, C, HW), xr.dtype),
        grid_spec=pltpu.PrefetchScalarGridSpec(
            num_scalar_prefetch=0,
            grid=(B, n_hw),
            in_specs=[
                pl.BlockSpec((1, 1, C), lambda b, c: (b, 0, 0)),
                pl.BlockSpec((1, C, THW), lambda b, c: (b, 0, c)),
            ],
            out_specs=pl.BlockSpec((1, C, THW), lambda b, c: (b, 0, c)),
        ),
        compiler_params=pltpu.CompilerParams(
            dimension_semantics=("parallel", "parallel"),
            vmem_limit_bytes=vmem_limit,
        ),
    )(s, xr)


def eca_forward(x, conv_w, *, block_bytes=None):
    """ECABlock forward.  x: (B, C, H, W); conv_w: (k,) Conv1d(1,1,k,bias=False) taps."""
    B, C, H, W = x.shape
    k = int(conv_w.shape[0])
    pad = (k - 1) // 2
    HW = H * W
    inv_hw = 1.0 / float(HW)

    default_block, vmem_limit = _chip_config()
    target_block_bytes = int(block_bytes) if block_bytes is not None else default_block

    xr = x.reshape(B, C, HW)                 # free reshape; no spatial padding
    conv_w = conv_w.astype(jnp.float32)

    bytes_per_sample = C * HW * x.dtype.itemsize
    if bytes_per_sample > target_block_bytes and HW > 128:
        out = _eca_chunked(xr, conv_w, k, pad, inv_hw, target_block_bytes, vmem_limit)
    else:
        out = _eca_fused(xr, conv_w, k, pad, inv_hw, target_block_bytes, vmem_limit)
    return out.reshape(B, C, H, W)


def eca_reference(x, conv_w):
    """Pure-JAX reference mirroring the PyTorch forward exactly."""
    B, C, H, W = x.shape
    k = conv_w.shape[0]
    pad = (k - 1) // 2
    pooled = jnp.mean(x.astype(jnp.float32), axis=(2, 3))       # (B, C)
    padded = jnp.pad(pooled, ((0, 0), (pad, pad)))               # (B, C + 2*pad)
    v = jnp.zeros((B, C), dtype=jnp.float32)
    for j in range(k):
        v = v + conv_w[j] * padded[:, j:j + C]
    s = jax.nn.sigmoid(v)
    return (x * s[:, :, None, None].astype(x.dtype)).astype(x.dtype)


def eca_kernel_size(channels, gamma=2, b=1):
    """Kernel size derived exactly as in the PyTorch __init__."""
    ks = int(abs((math.log(channels, 2) + b) / gamma))
    return ks if ks % 2 else ks + 1


if __name__ == "__main__":
    def check(x, w, **kw):
        out = jax.block_until_ready(eca_forward(x, w, **kw))
        ref = eca_reference(x, w)
        assert out.shape == x.shape and out.dtype == x.dtype
        err = float(jnp.max(jnp.abs(out - ref)))
        assert jnp.allclose(out, ref, atol=1e-5, rtol=1e-5), err

    key = jax.random.PRNGKey(0)

    # Shape 1: B=2, C=16, 16x16 (kernel_size 3) -> fused single-block path.
    ks = eca_kernel_size(16)
    k1, k2, key = jax.random.split(key, 3)
    x1 = jax.random.normal(k1, (2, 16, 16, 16), dtype=jnp.float32)
    w1 = jax.random.normal(k2, (ks,), dtype=jnp.float32) * 0.5
    check(x1, w1)

    # Shape 2: HW=144 (not a multiple of 128), B=3 (awkward batch).
    ks = eca_kernel_size(8)
    k1, k2, key = jax.random.split(key, 3)
    x2 = jax.random.normal(k1, (3, 8, 12, 12), dtype=jnp.float32)
    w2 = jax.random.normal(k2, (ks,), dtype=jnp.float32) * 0.5
    check(x2, w2)                                    # fused, masked tail stores
    check(x2, w2, block_bytes=2 * 8 * 144 * 4)       # fused, TB=2 over B=3 (edge block)
    check(x2, w2, block_bytes=2048)                  # spatial-chunked fallback path

    print("KERNEL_OK")
</pallas_src>

<mosaic_0001>
module attributes {stable_mosaic.version = 11 : i64} {
  func.func @kernel(%arg0: i32, %arg1: memref<3xf32, #tpu.memory_space<smem>>, %arg2: memref<2x16x256xf32, #tpu.memory_space<vmem>>, %arg3: memref<2x16x256xf32, #tpu.memory_space<vmem>>) attributes {dimension_semantics = [#tpu.dimension_semantics<parallel>], iteration_bounds = array<i64: 1>, scalar_prefetch = 0 : i64, scratch_operands = 0 : i64, tpu.core_type = #tpu.core_type<tc>, window_params = [{transform_indices = @transform_0, window_bounds = array<i64: 3>}, {transform_indices = @transform_1, window_bounds = array<i64: 2, 16, 256>}, {transform_indices = @transform_2, window_bounds = array<i64: 2, 16, 256>}]} {
    %c0 = arith.constant 0 : index
    %c0_0 = arith.constant 0 : index
    %c0_1 = arith.constant 0 : index
    %0 = vector.load %arg2[%c0, %c0_0, %c0_1] : memref<2x16x256xf32, #tpu.memory_space<vmem>>, vector<2x16x256xf32>
    %cst = arith.constant dense<0.000000e+00> : vector<2x16xf32>
    %1 = vector.multi_reduction <add>, %0, %cst [2] : vector<2x16x256xf32> to vector<2x16xf32>
    %cst_2 = arith.constant 3.906250e-03 : f32
    %2 = vector.broadcast %cst_2 : f32 to vector<2x16xf32>
    %3 = arith.mulf %1, %2 : vector<2x16xf32>
    %cst_3 = arith.constant 0.000000e+00 : f32
    %4 = vector.broadcast %cst_3 : f32 to vector<2x1xf32>
    %5 = tpu.concatenate %4, %3, %4 in 1 : vector<2x1xf32>, vector<2x16xf32>, vector<2x1xf32> -> vector<2x18xf32>
    %cst_4 = arith.constant 0.000000e+00 : f32
    %6 = vector.broadcast %cst_4 : f32 to vector<2x16xf32>
    %c0_5 = arith.constant 0 : index
    %7 = memref.load %arg1[%c0_5] : memref<3xf32, #tpu.memory_space<smem>>
    %8 = vector.extract_strided_slice %5 {offsets = [0, 0], sizes = [2, 16], strides = [1, 1]} : vector<2x18xf32> to vector<2x16xf32>
    %9 = vector.broadcast %7 : f32 to vector<2x16xf32>
    %10 = arith.mulf %9, %8 : vector<2x16xf32>
    %11 = arith.addf %6, %10 : vector<2x16xf32>
    %c1 = arith.constant 1 : index
    %12 = memref.load %arg1[%c1] : memref<3xf32, #tpu.memory_space<smem>>
    %13 = vector.extract_strided_slice %5 {offsets = [0, 1], sizes = [2, 16], strides = [1, 1]} : vector<2x18xf32> to vector<2x16xf32>
    %14 = vector.broadcast %12 : f32 to vector<2x16xf32>
    %15 = arith.mulf %14, %13 : vector<2x16xf32>
    %16 = arith.addf %11, %15 : vector<2x16xf32>
    %c2 = arith.constant 2 : index
    %17 = memref.load %arg1[%c2] : memref<3xf32, #tpu.memory_space<smem>>
    %18 = vector.extract_strided_slice %5 {offsets = [0, 2], sizes = [2, 16], strides = [1, 1]} : vector<2x18xf32> to vector<2x16xf32>
    %19 = vector.broadcast %17 : f32 to vector<2x16xf32>
    %20 = arith.mulf %19, %18 : vector<2x16xf32>
    %21 = arith.addf %16, %20 : vector<2x16xf32>
    %22 = arith.negf %21 : vector<2x16xf32>
    %23 = math.exp %22 : vector<2x16xf32>
    %cst_6 = arith.constant 1.000000e+00 : f32
    %24 = vector.broadcast %cst_6 : f32 to vector<2x16xf32>
    %25 = arith.addf %24, %23 : vector<2x16xf32>
    %26 = arith.divf %24, %25 : vector<2x16xf32>
    %c0_7 = arith.constant 0 : index
    %c0_8 = arith.constant 0 : index
    %c0_9 = arith.constant 0 : index
    %27 = vector.load %arg2[%c0_7, %c0_8, %c0_9] : memref<2x16x256xf32, #tpu.memory_space<vmem>>, vector<2x16x256xf32>
    %28 = vector.shape_cast %26 : vector<2x16xf32> to vector<2x16x1xf32>
    %29 = vector.broadcast %28 : vector<2x16x1xf32> to vector<2x16x256xf32>
    %30 = arith.mulf %27, %29 : vector<2x16x256xf32>
    %c0_10 = arith.constant 0 : index
    %c0_11 = arith.constant 0 : index
    %c0_12 = arith.constant 0 : index
    %31 = vector.load %arg3[%c0_10, %c0_11, %c0_12] : memref<2x16x256xf32, #tpu.memory_space<vmem>>, vector<2x16x256xf32>
    tpu.vector_store %arg3[%c0_10, %c0_11, %c0_12], %30 {strides = array<i32>} : memref<2x16x256xf32, #tpu.memory_space<vmem>>, vector<2x16x256xf32>,
    return
  }
  func.func @transform_0(%arg0: i32) -> i32 {
    %c0_i32 = arith.constant 0 : i32
    %c0_i32_0 = arith.constant 0 : i32
    return %c0_i32 : i32
  }
  func.func @transform_1(%arg0: i32) -> (i32, i32, i32) {
    %c0_i32 = arith.constant 0 : i32
    %c0_i32_0 = arith.constant 0 : i32
    %c0_i32_1 = arith.constant 0 : i32
    return %arg0, %c0_i32, %c0_i32_0 : i32, i32, i32
  }
  func.func @transform_2(%arg0: i32) -> (i32, i32, i32) {
    %c0_i32 = arith.constant 0 : i32
    %c0_i32_0 = arith.constant 0 : i32
    %c0_i32_1 = arith.constant 0 : i32
    return %arg0, %c0_i32, %c0_i32_0 : i32, i32, i32
  }
}

</mosaic_0001>

<llo_original>
// kernel: tpu_custom_call.1
$region0: #{tpu_custom_call.1}
  #allocation0 [shape = 'u32[]', space=smem, size = 0x4, offset = 0x4, fixed_abs, tag = 'smem constant byte address 0x4 - core index']
  #allocation1 [shape = 'u32[144,128]{1,0:T(1,128)}', space=vmem, size = 0x12000, scoped, tag = 'internal scratch']
  %s0 = inlined_call_operand.hbm [shape: f32[3], index: 0, kind: input, shape index: {}]
  %s1 = inlined_call_operand.hbm [shape: f32[2,16,256], index: 1, kind: input, shape index: {}]
  %s2 = inlined_call_operand.hbm [shape: f32[2,16,256], index: 2, kind: output, shape index: {}]
  %s3 = sld [smem:[#allocation0]]
  $region26: #{tpu_custom_call.1} parent=0
    _
  %s5 = ssub.s32 1, %s3
  %s6 = scalar_select 0, %s5, %s3
  $region1: #{tpu_custom_call.1} parent=0
    #allocation2 [shape = 'u8[512]{0}', space=smem, size = 0x200, scoped, tag = 'input window, operand 0, single buffered']
    #allocation3 [shape = 's32[1]{0}', space=sflag, size = 0x4, scoped, tag = 'scoped memory for tpu_custom_call.1']
    #allocation4 [shape = 's32[1]{0}', space=sflag, size = 0x4, scoped, tag = 'scoped memory for tpu_custom_call.1']
    #allocation5 [shape = 's32[1]{0}', space=sflag, size = 0x4, scoped, tag = 'scoped memory for tpu_custom_call.1']
    #allocation6 [shape = 'u8[32768]{0}', space=vmem, size = 0x8000, scoped, tag = 'input window, operand 1, single buffered']
    #allocation7 [shape = 'u8[32768]{0}', space=vmem, size = 0x8000, scoped, tag = 'output window, operand 0, single buffered']
    %7 = vsyncpa [#allocation5], 0
    %8 = vsyncpa [#allocation3], 0
    %9 = vsyncpa [#allocation4], 0
    // Predicated region
    $region2: #{tpu_custom_call.1} parent=1 // pred_check
      _
    $region3: #{tpu_custom_call.1} parent=1 // pred_check_branch
      %11 = sbr.rel (0) target = $region5
    $region4: #{tpu_custom_call.1} parent=1 // pred_region
      %s13 = ssub.s32 16, 16
      %14 = vsyncadd [#allocation5], %s13
      %17 = dma.hbm_to_smem %s0, 16, [#allocation2], [#allocation5]
    $region5: #{tpu_custom_call.1} parent=1 // pred_fallthru
      _
    // Predicated region
    $region6: #{tpu_custom_call.1} parent=1 // pred_check
      _
    $region7: #{tpu_custom_call.1} parent=1 // pred_check_branch
      %19 = sbr.rel (0) target = $region9
    $region8: #{tpu_custom_call.1} parent=1 // pred_region
      %s21 = ssub.s32 1024, 1024
      %22 = vsyncadd [#allocation3], %s21
      %s23 = sshll.u32 [#allocation6], 4
      %s24 = int_to_ptr.vmem [resolvable:$true] %s23
      %29 = dma.hbm_to_vmem [thread:$0]  %s1, 1024, %s24, [#allocation3], 256, 256, 16
    $region9: #{tpu_custom_call.1} parent=1 // pred_fallthru
      _
    // Predicated region
    $region10: #{tpu_custom_call.1} parent=1 // pred_check
      _
    $region11: #{tpu_custom_call.1} parent=1 // pred_check_branch
      %31 = sbr.rel (0) target = $region13
    $region12: #{tpu_custom_call.1} parent=1 // pred_region
      %32 = dma.done [#allocation5], 16
    $region13: #{tpu_custom_call.1} parent=1 // pred_fallthru
      _
    // Predicated region
    $region14: #{tpu_custom_call.1} parent=1 // pred_check
      _
    $region15: #{tpu_custom_call.1} parent=1 // pred_check_branch
      %34 = sbr.rel (0) target = $region17
    $region16: #{tpu_custom_call.1} parent=1 // pred_region
      %35 = dma.done [#allocation3], 1024
    $region17: #{tpu_custom_call.1} parent=1 // pred_fallthru
      _
    %36 = sfence
    %v37 = vld [vmem:[#allocation6] sm:$0xff]
    %v38 = vld [vmem:[#allocation6 + $0x8] sm:$0xff]
    %v39 = vld [vmem:[#allocation6 + $0x10] sm:$0xff]
    %v40 = vld [vmem:[#allocation6 + $0x18] sm:$0xff]
    %v41 = vld [vmem:[#allocation6 + $0x20] sm:$0xff]
    %v42 = vld [vmem:[#allocation6 + $0x28] sm:$0xff]
    %v43 = vld [vmem:[#allocation6 + $0x30] sm:$0xff]
    %v44 = vld [vmem:[#allocation6 + $0x38] sm:$0xff]
    %v45 = vadd.f32 %v37, %v38
    %46 = vadd.xlane.f32.xlu0 %v45
    %v47 = vpop.xlane.xlu0 %46
    %v48 = vadd.f32 %v39, %v40
    %49 = vadd.xlane.f32.xlu0 %v48
    %v50 = vpop.xlane.xlu0 %49
    %v51 = vadd.f32 %v41, %v42
    %52 = vadd.xlane.f32.xlu0 %v51
    %v53 = vpop.xlane.xlu0 %52
    %v54 = vadd.f32 %v43, %v44
    %55 = vadd.xlane.f32.xlu0 %v54
    %v56 = vpop.xlane.xlu0 %55
    %v57 = vmul.f32 %v47, 0.00390625
    %v58 = vmul.f32 %v50, 0.00390625
    %v59 = vmul.f32 %v53, 0.00390625
    %v60 = vmul.f32 %v56, 0.00390625
    %v65 = vlaneseq
    %v66 = vand.u32 %v65, 127
    %v67 = vadd.s32 %v66, 4294967295
    %v68 = vlaneseq
    %v69 = vshrl.u32 %v68, 7
    %v70 = vsub.s32 %v67, %v69
    %v71 = vrot.slane %v57, %v70
    %v72 = vadd.s32 %v66, 4294967287
    %v73 = vlaneseq
    %v74 = vshrl.u32 %v73, 7
    %v75 = vsub.s32 %v72, %v74
    %v76 = vrot.slane %v58, %v75
    %vm77 = vcmask 138312
    %v78 = vsel %vm77, %v76, %v71
    %v79 = vlaneseq
    %v80 = vshrl.u32 %v79, 7
    %v81 = vsub.s32 %v67, %v80
    %v82 = vrot.slane %v59, %v81
    %v83 = vlaneseq
    %v84 = vshrl.u32 %v83, 7
    %v85 = vsub.s32 %v72, %v84
    %v86 = vrot.slane %v60, %v85
    %v87 = vsel %vm77, %v86, %v82
    %vm88 = vcmask 1041409
    %v89 = vsel %vm88, %v87, %v78
    %vm91 = vcmask 7168
    %v92 = vsel %vm91, 0.0, %v89
    %vm93 = vcmask 138240
    %v94 = vsel %vm93, %v92, 0.0
    %s95 = sld [smem:[#allocation2]]
    %v96 = vstv %s95
    %v97 = vmul.f32 %v96, %v94
    %v98 = vadd.f32 %v97, 0.0
    %s99 = sld [smem:[#allocation2 + $0x1]]
    %v100 = vstv %s99
    %v101 = vmul.f32 %v100, %v94
    %103 = vrot.lane.b32.xlu0 %v101, 127
    %v104 = vpop.permute.xlu0 %103
    %v106 = vadd.f32 %v98, %v104
    %s107 = sld [smem:[#allocation2 + $0x2]]
    %v108 = vstv %s107
    %v109 = vmul.f32 %v108, %v94
    %111 = vrot.lane.b32.xlu0 %v109, 126
    %v112 = vpop.permute.xlu0 %111
    %v114 = vadd.f32 %v106, %v112
    %v115 = vxor.u32 %v114, 2147483648
    %v116 = vmul.f32 %v115, 1.442695
    %v117 = vpow.pop %v116
    %v118 = vadd.f32 %v117, 1.0
    %v119 = vrcp.pop %v118
    %v120 = vmul.f32 1.0, %v119
    %v121 = vlaneseq
    %v122 = vshrl.u32 %v121, 7
    %v123 = vsub.s32 0, %v122
    %v124 = vrot.slane %v120, %v123
    %126 = vbcast.lane.b32.xlu0 %v124, 256
    %v127 = vpop.permute.xlu0 %126
    %s129 = sor.u32 256, 8
    %130 = vbcast.lane.b32.xlu0 %v124, %s129
    %v131 = vpop.permute.xlu0 %130
    %v132 = vlaneseq
    %v133 = vshrl.u32 %v132, 7
    %v134 = vsub.s32 1, %v133
    %v135 = vrot.slane %v120, %v134
    %137 = vbcast.lane.b32.xlu0 %v135, 256
    %v138 = vpop.permute.xlu0 %137
    %s140 = sor.u32 256, 8
    %141 = vbcast.lane.b32.xlu0 %v135, %s140
    %v142 = vpop.permute.xlu0 %141
    %v143 = vmul.f32 %v37, %v127
    %v144 = vmul.f32 %v38, %v127
    %v145 = vmul.f32 %v39, %v131
    %v146 = vmul.f32 %v40, %v131
    %v147 = vmul.f32 %v41, %v138
    %v148 = vmul.f32 %v42, %v138
    %v149 = vmul.f32 %v43, %v142
    %v150 = vmul.f32 %v44, %v142
    %151 = vst [vmem:[#allocation7] sm:$0xff] %v143
    %152 = vst [vmem:[#allocation7 + $0x8] sm:$0xff] %v144
    %153 = vst [vmem:[#allocation7 + $0x10] sm:$0xff] %v145
    %154 = vst [vmem:[#allocation7 + $0x18] sm:$0xff] %v146
    %155 = vst [vmem:[#allocation7 + $0x20] sm:$0xff] %v147
    %156 = vst [vmem:[#allocation7 + $0x28] sm:$0xff] %v148
    %157 = vst [vmem:[#allocation7 + $0x30] sm:$0xff] %v149
    %158 = vst [vmem:[#allocation7 + $0x38] sm:$0xff] %v150
    // Predicated region
    $region18: #{tpu_custom_call.1} parent=1 // pred_check
      _
    $region19: #{tpu_custom_call.1} parent=1 // pred_check_branch
      %160 = sbr.rel (0) target = $region21
    $region20: #{tpu_custom_call.1} parent=1 // pred_region
      %s162 = ssub.s32 1024, 1024
      %163 = vsyncadd [#allocation4], %s162
      %s164 = sshll.u32 [#allocation7], 4
      %s165 = int_to_ptr.vmem [resolvable:$true] %s164
      %170 = dma.vmem_to_hbm [thread:$0]  %s165, 1024, %s2, [#allocation4], 256, 256, 16
    $region21: #{tpu_custom_call.1} parent=1 // pred_fallthru
      _
    // Predicated region
    $region22: #{tpu_custom_call.1} parent=1 // pred_check
      _
    $region23: #{tpu_custom_call.1} parent=1 // pred_check_branch
      %172 = sbr.rel (0) target = $region25
    $region24: #{tpu_custom_call.1} parent=1 // pred_region
      %173 = dma.done [#allocation4], 1024
    $region25: #{tpu_custom_call.1} parent=1 // pred_fallthru
      _
    %174 = vsyncpa [#allocation3], 1
    %175 = vsyncpa [#allocation4], 1
    %176 = vsyncpa [#allocation5], 1

</llo_original>
